<compile_context>
chip_gen: v5e
topology: v5e:2x2
jax: 0.10.0
libtpu: 0.0.40
codegen_flags: <defaults>
</compile_context>

<pallas_src>
import jax
import jax.numpy as jnp
from jax.experimental import pallas as pl
from jax.experimental.pallas import tpu as pltpu  # noqa: F401  (TPU backend; scratch/params when scaled up)


def _fused_linear_add_relu_kernel(x_ref, wt_ref, b_ref, other_ref, o_ref):
    # x: (M, K), wt: (K, N) [pre-transposed at init], b: (1, N), other: (M, N)
    y = jnp.dot(x_ref[...], wt_ref[...], preferred_element_type=jnp.float32)  # MXU, contracts K directly
    o_ref[...] = jnp.maximum(y + b_ref[...] + other_ref[...], 0.0)


def prepare_params(w, b):
    """One-time parameter prep: PyTorch-layout (N, K) weight -> (K, N); bias -> (1, N)."""
    N = w.shape[0]
    return {"w_t": jnp.asarray(w).T, "b2d": jnp.asarray(b).reshape(1, N)}


def fused_linear_add_relu(x, w_t, b2d, other):
    """relu(x @ w_t + b2d + other); w_t is (K, N), b2d is (1, N)."""
    M, K = x.shape
    N = w_t.shape[1]
    return pl.pallas_call(
        _fused_linear_add_relu_kernel,
        out_shape=jax.ShapeDtypeStruct((M, N), jnp.float32),
        # Single grid point; each block equals the full (tiny) array.
        in_specs=[
            pl.BlockSpec((M, K), lambda: (0, 0)),
            pl.BlockSpec((K, N), lambda: (0, 0)),
            pl.BlockSpec((1, N), lambda: (0, 0)),
            pl.BlockSpec((M, N), lambda: (0, 0)),
        ],
        out_specs=pl.BlockSpec((M, N), lambda: (0, 0)),
    )(x, w_t, b2d, other)


def model_forward(params, inp, other):
    """Equivalent of Model.forward: relu(linear(inp) + other)."""
    return fused_linear_add_relu(inp, params["w_t"], params["b2d"], other)


def reference_forward(w, b, inp, other):
    # Pure-JAX reference mirroring the PyTorch graph exactly (with transposes).
    t1 = (inp @ w.T + b).T
    t2 = t1 + other.T
    t3 = jnp.maximum(t2, 0.0)
    return t3.T


if __name__ == "__main__":
    key = jax.random.PRNGKey(0)
    k_in, k_other, k_w, k_b = jax.random.split(key, 4)

    # Shapes implied by the module: Linear(8, 8), input/other (8, 8).
    inp = jax.random.normal(k_in, (8, 8), dtype=jnp.float32)
    other = jax.random.normal(k_other, (8, 8), dtype=jnp.float32)

    # Deterministic parameter init (PyTorch Linear default: U(-1/sqrt(fan_in), +)).
    bound = 1.0 / jnp.sqrt(8.0)
    w = jax.random.uniform(k_w, (8, 8), jnp.float32, -bound, bound)
    b = jax.random.uniform(k_b, (8,), jnp.float32, -bound, bound)

    # One-time parameter prep (transpose + bias reshape hoisted out of forward).
    params = prepare_params(w, b)

    out = model_forward(params, inp, other)
    out = jax.block_until_ready(out)

    ref = reference_forward(w, b, inp, other)

    assert out.shape == (8, 8)
    assert jnp.allclose(out, ref, atol=1e-5, rtol=1e-5)

    print("KERNEL_OK")
</pallas_src>

<mosaic_0001>
module attributes {stable_mosaic.version = 11 : i64} {
  func.func @_fused_linear_add_relu_kernel(%arg0: memref<8x8xf32, #tpu.memory_space<vmem>>, %arg1: memref<8x8xf32, #tpu.memory_space<vmem>>, %arg2: memref<1x8xf32, #tpu.memory_space<vmem>>, %arg3: memref<8x8xf32, #tpu.memory_space<vmem>>, %arg4: memref<8x8xf32, #tpu.memory_space<vmem>>) attributes {dimension_semantics = [], scalar_prefetch = 0 : i64, scratch_operands = 0 : i64, tpu.core_type = #tpu.core_type<tc>} {
    %c0 = arith.constant 0 : index
    %c0_0 = arith.constant 0 : index
    %0 = vector.load %arg0[%c0, %c0_0] : memref<8x8xf32, #tpu.memory_space<vmem>>, vector<8x8xf32>
    %c0_1 = arith.constant 0 : index
    %c0_2 = arith.constant 0 : index
    %1 = vector.load %arg1[%c0_1, %c0_2] : memref<8x8xf32, #tpu.memory_space<vmem>>, vector<8x8xf32>
    %cst = arith.constant dense<0.000000e+00> : vector<8x8xf32>
    %2 = tpu.matmul %0, %1, %cst {dimension_numbers = #tpu.dot_dimension_numbers<[1], [0], [0], [1], [0, 0, 1, 1], [], []>} : vector<8x8xf32>, vector<8x8xf32>, vector<8x8xf32> -> vector<8x8xf32>
    %c0_3 = arith.constant 0 : index
    %c0_4 = arith.constant 0 : index
    %3 = vector.load %arg2[%c0_3, %c0_4] : memref<1x8xf32, #tpu.memory_space<vmem>>, vector<1x8xf32>
    %4 = vector.broadcast %3 : vector<1x8xf32> to vector<8x8xf32>
    %5 = arith.addf %2, %4 : vector<8x8xf32>
    %c0_5 = arith.constant 0 : index
    %c0_6 = arith.constant 0 : index
    %6 = vector.load %arg3[%c0_5, %c0_6] : memref<8x8xf32, #tpu.memory_space<vmem>>, vector<8x8xf32>
    %7 = arith.addf %5, %6 : vector<8x8xf32>
    %cst_7 = arith.constant 0.000000e+00 : f32
    %8 = vector.broadcast %cst_7 : f32 to vector<8x8xf32>
    %9 = arith.maximumf %7, %8 : vector<8x8xf32>
    %c0_8 = arith.constant 0 : index
    %c0_9 = arith.constant 0 : index
    %10 = vector.load %arg4[%c0_8, %c0_9] : memref<8x8xf32, #tpu.memory_space<vmem>>, vector<8x8xf32>
    tpu.vector_store %arg4[%c0_8, %c0_9], %9 {strides = array<i32>} : memref<8x8xf32, #tpu.memory_space<vmem>>, vector<8x8xf32>,
    return
  }
}

</mosaic_0001>

<llo_original>
// kernel: tpu_custom_call.1
$region0: #{tpu_custom_call.1}
  #allocation0 [shape = 'u32[]', space=smem, size = 0x4, offset = 0x4, fixed_abs, tag = 'smem constant byte address 0x4 - core index']
  #allocation1 [shape = 'u32[72,128]{1,0:T(1,128)}', space=vmem, size = 0x9000, scoped, tag = 'internal scratch']
  %s0 = inlined_call_operand.hbm [shape: f32[8,8], index: 0, kind: input, shape index: {}]
  %s1 = inlined_call_operand.hbm [shape: f32[8,8], index: 1, kind: input, shape index: {}]
  %s2 = inlined_call_operand.vmem [shape: f32[1,8], index: 2, kind: input, shape index: {}]
  %s3 = inlined_call_operand.hbm [shape: f32[8,8], index: 3, kind: input, shape index: {}]
  %s4 = inlined_call_operand.hbm [shape: f32[8,8], index: 4, kind: output, shape index: {}]
  %s5 = sld [smem:[#allocation0]]
  $region38: #{tpu_custom_call.1} parent=0
    _
  %s7 = ssub.s32 1, %s5
  %s8 = scalar_select 0, %s7, %s5
  $region1: #{tpu_custom_call.1} parent=0
    #allocation2 [shape = 'u8[4096]{0}', space=vmem, size = 0x1000, scoped, tag = 'input window, operand 0, single buffered']
    #allocation3 [shape = 's32[1]{0}', space=sflag, size = 0x4, scoped, tag = 'scoped memory for tpu_custom_call.1']
    #allocation4 [shape = 's32[1]{0}', space=sflag, size = 0x4, scoped, tag = 'scoped memory for tpu_custom_call.1']
    #allocation5 [shape = 'u8[4096]{0}', space=vmem, size = 0x1000, scoped, tag = 'input window, operand 1, single buffered']
    #allocation6 [shape = 's32[1]{0}', space=sflag, size = 0x4, scoped, tag = 'scoped memory for tpu_custom_call.1']
    #allocation7 [shape = 'u8[4096]{0}', space=vmem, size = 0x1000, scoped, tag = 'input window, operand 3, single buffered']
    #allocation8 [shape = 'u8[4096]{0}', space=vmem, size = 0x1000, scoped, tag = 'output window, operand 0, single buffered']
    %9 = vsyncpa [#allocation3], 0
    %10 = vsyncpa [#allocation6], 0
    %11 = vsyncpa [#allocation4], 0
    // Predicated region
    $region2: #{tpu_custom_call.1} parent=1 // pred_check
      _
    $region3: #{tpu_custom_call.1} parent=1 // pred_check_branch
      %13 = sbr.rel (0) target = $region5
    $region4: #{tpu_custom_call.1} parent=1 // pred_region
      %15 = vsyncadd [#allocation3], 0
      %s17 = sshll.u32 %s0, 4
      %s18 = int_to_ptr.hbm [resolvable:$true] %s17
      %s19 = sshll.u32 [#allocation2], 4
      %s20 = int_to_ptr.vmem [resolvable:$true] %s19
      %22 = dma.hbm_to_vmem [thread:$0]  %s18, 128, %s20, [#allocation3]
    $region5: #{tpu_custom_call.1} parent=1 // pred_fallthru
      _
    // Predicated region
    $region6: #{tpu_custom_call.1} parent=1 // pred_check
      _
    $region7: #{tpu_custom_call.1} parent=1 // pred_check_branch
      %24 = sbr.rel (0) target = $region9
    $region8: #{tpu_custom_call.1} parent=1 // pred_region
      %26 = vsyncadd [#allocation6], 0
      %s28 = sshll.u32 %s1, 4
      %s29 = int_to_ptr.hbm [resolvable:$true] %s28
      %s30 = sshll.u32 [#allocation5], 4
      %s31 = int_to_ptr.vmem [resolvable:$true] %s30
      %33 = dma.hbm_to_vmem [thread:$0]  %s29, 128, %s31, [#allocation6]
    $region9: #{tpu_custom_call.1} parent=1 // pred_fallthru
      _
    // Predicated region
    $region10: #{tpu_custom_call.1} parent=1 // pred_check
      _
    $region11: #{tpu_custom_call.1} parent=1 // pred_check_branch
      %35 = sbr.rel (0) target = $region13
    $region12: #{tpu_custom_call.1} parent=1 // pred_region
      _
    $region13: #{tpu_custom_call.1} parent=1 // pred_fallthru
      _
    // Predicated region
    $region14: #{tpu_custom_call.1} parent=1 // pred_check
      _
    $region15: #{tpu_custom_call.1} parent=1 // pred_check_branch
      %37 = sbr.rel (0) target = $region17
    $region16: #{tpu_custom_call.1} parent=1 // pred_region
      %39 = vsyncadd [#allocation6], 0
      %s41 = sshll.u32 %s3, 4
      %s42 = int_to_ptr.hbm [resolvable:$true] %s41
      %s43 = sshll.u32 [#allocation7], 4
      %s44 = int_to_ptr.vmem [resolvable:$true] %s43
      %46 = dma.hbm_to_vmem [thread:$0]  %s42, 128, %s44, [#allocation6]
    $region17: #{tpu_custom_call.1} parent=1 // pred_fallthru
      _
    // Predicated region
    $region18: #{tpu_custom_call.1} parent=1 // pred_check
      _
    $region19: #{tpu_custom_call.1} parent=1 // pred_check_branch
      %48 = sbr.rel (0) target = $region21
    $region20: #{tpu_custom_call.1} parent=1 // pred_region
      %50 = dma.done [#allocation3], 128
    $region21: #{tpu_custom_call.1} parent=1 // pred_fallthru
      _
    // Predicated region
    $region22: #{tpu_custom_call.1} parent=1 // pred_check
      _
    $region23: #{tpu_custom_call.1} parent=1 // pred_check_branch
      %52 = sbr.rel (0) target = $region25
    $region24: #{tpu_custom_call.1} parent=1 // pred_region
      %54 = dma.done [#allocation6], 128
    $region25: #{tpu_custom_call.1} parent=1 // pred_fallthru
      _
    // Predicated region
    $region26: #{tpu_custom_call.1} parent=1 // pred_check
      _
    $region27: #{tpu_custom_call.1} parent=1 // pred_check_branch
      %56 = sbr.rel (0) target = $region29
    $region28: #{tpu_custom_call.1} parent=1 // pred_region
      %58 = dma.done [#allocation6], 128
    $region29: #{tpu_custom_call.1} parent=1 // pred_fallthru
      _
    %v59 = vld [vmem:[#allocation2] sm:$0xff]
    %v60 = vld [vmem:[#allocation5] sm:$0xff]
    %v61 = vld [vmem:[%s2] sm:$0x1]
    %v63 = vperm.slane %v61, 0
    %vm65 = vcmask 64512
    %v67 = vsel %vm65, %v59, 0
    %69 = vmatpush.msra.mxu0 0.0
    %70 = vmatpush.msra.mxu0 0.0
    %71 = vmatpush.msra.mxu0 0.0
    %72 = vmatpush.msra.mxu0 0.0
    %73 = vmatpush.msra.mxu0 0.0
    %74 = vmatpush.msra.mxu0 0.0
    %75 = vmatpush.msra.mxu0 0.0
    %76 = vmatpush.msra.mxu0 0.0
    %77 = vmatpush.msra.mxu0 0.0
    %78 = vmatpush.msra.mxu0 0.0
    %79 = vmatpush.msra.mxu0 0.0
    %80 = vmatpush.msra.mxu0 0.0
    %81 = vmatpush.msra.mxu0 0.0
    %82 = vmatpush.msra.mxu0 0.0
    %83 = vmatpush.msra.mxu0 0.0
    %84 = vmatpush.msra.mxu0 %v60
    %85 = vmatmul.f32.gmra.mxu0 %v67
    %v86 = vpop.f32.mrf.mxu0
    %v87 = vadd.f32 %v63, %v86
    %88 = vdwg.mxu0
    %v89 = vld [vmem:[#allocation7] sm:$0xff]
    %v90 = vadd.f32 %v87, %v89
    %v91 = vmax.f32 %v90, 0.0
    %92 = vst.msk [vmem:[#allocation8] sm:$0xff] %vm65, %v91
    // Predicated region
    $region30: #{tpu_custom_call.1} parent=1 // pred_check
      _
    $region31: #{tpu_custom_call.1} parent=1 // pred_check_branch
      %94 = sbr.rel (0) target = $region33
    $region32: #{tpu_custom_call.1} parent=1 // pred_region
      %96 = vsyncadd [#allocation4], 0
      %s98 = sshll.u32 [#allocation8], 4
      %s99 = int_to_ptr.vmem [resolvable:$true] %s98
      %s100 = sshll.u32 %s4, 4
      %s101 = int_to_ptr.hbm [resolvable:$true] %s100
      %103 = dma.vmem_to_hbm [thread:$0]  %s99, 128, %s101, [#allocation4]
    $region33: #{tpu_custom_call.1} parent=1 // pred_fallthru
      _
    // Predicated region
    $region34: #{tpu_custom_call.1} parent=1 // pred_check
      _
    $region35: #{tpu_custom_call.1} parent=1 // pred_check_branch
      %105 = sbr.rel (0) target = $region37
    $region36: #{tpu_custom_call.1} parent=1 // pred_region
      %107 = dma.done [#allocation4], 128
    $region37: #{tpu_custom_call.1} parent=1 // pred_fallthru
      _
    %108 = vsyncpa [#allocation3], 1
    %109 = vsyncpa [#allocation6], 1
    %110 = vsyncpa [#allocation4], 1

</llo_original>
